<compile_context>
chip_gen: v5e
topology: v5e:2x2
jax: 0.10.0
libtpu: 0.0.40
codegen_flags: <defaults>
</compile_context>

<pallas_src>
import jax
import jax.numpy as jnp
from jax.experimental import pallas as pl
from jax.experimental.pallas import tpu as pltpu


def attention_kernel(enc_ref, dec_ref, we_ref, be_ref, wd_ref, bd_ref, wf_ref,
                     awe_ref, alpha_ref):
    # enc_ref: (TB, P, E)  dec_ref: (TB, D)
    TB, P, E = enc_ref.shape
    A = we_ref.shape[1]

    enc = enc_ref[...]                                   # (TB, P, E)
    enc_flat = enc.reshape(TB * P, E)                    # layout-preserving collapse

    # att1 = encoder_att(encoder_out)  -> one big (TB*P, E)@(E, A) MXU matmul
    att1 = jnp.dot(enc_flat, we_ref[...],
                   preferred_element_type=jnp.float32) + be_ref[...]     # (TB*P, A)

    # att2 = decoder_att(decoder_hidden) -> single (TB, D)@(D, A) matmul per block
    att2 = jnp.dot(dec_ref[...], wd_ref[...],
                   preferred_element_type=jnp.float32) + bd_ref[...]     # (TB, A)

    # relu(att1 + att2.unsqueeze(1))
    h = jnp.maximum(att1.reshape(TB, P, A) + att2[:, None, :], 0.0)      # (TB, P, A)

    # full_att: N=1 matmul replaced by VPU multiply + lane reduce.
    # b_full is omitted: a constant added before softmax over pixels cancels exactly.
    wf_row = wf_ref[...].reshape(1, 1, A)
    att = jnp.sum(h * wf_row, axis=-1)                                   # (TB, P)

    # softmax over the pixel axis (PyTorch dim=1), P on the lane axis
    m = jnp.max(att, axis=-1, keepdims=True)
    e = jnp.exp(att - m)
    s = jnp.sum(e, axis=-1, keepdims=True)
    alpha = e * pl.reciprocal(s, approx=False)                           # (TB, P)

    alpha_ref[...] = alpha
    # attention weighted encoding: sum_p alpha_p * enc_p  -> (TB, E)
    awe_ref[...] = jnp.sum(enc * alpha[:, :, None], axis=1)


def attention_forward(encoder_out, decoder_hidden, params, *, tb=8):
    B, P, E = encoder_out.shape
    D = decoder_hidden.shape[1]
    we_t, be, wd_t, bd, wf_row = params
    A = we_t.shape[1]

    TB = min(tb, B)
    grid = (pl.cdiv(B, TB),)

    cost = pl.CostEstimate(
        flops=2 * B * P * E * A + 2 * B * D * A + 2 * B * P * A + 2 * B * P * E,
        transcendentals=B * P,
        bytes_accessed=4 * (B * P * E + B * D + E * A + D * A + 3 * A + B * E + B * P),
    )

    awe, alpha = pl.pallas_call(
        attention_kernel,
        out_shape=(jax.ShapeDtypeStruct((B, E), jnp.float32),
                   jax.ShapeDtypeStruct((B, P), jnp.float32)),
        grid_spec=pltpu.PrefetchScalarGridSpec(
            num_scalar_prefetch=0,
            grid=grid,
            in_specs=[
                pl.BlockSpec((TB, P, E), lambda b: (b, 0, 0)),   # encoder_out tile
                pl.BlockSpec((TB, D), lambda b: (b, 0)),         # decoder_hidden tile
                pl.BlockSpec((E, A), lambda b: (0, 0)),          # W_enc^T (resident)
                pl.BlockSpec((1, A), lambda b: (0, 0)),          # b_enc
                pl.BlockSpec((D, A), lambda b: (0, 0)),          # W_dec^T (resident)
                pl.BlockSpec((1, A), lambda b: (0, 0)),          # b_dec
                pl.BlockSpec((1, A), lambda b: (0, 0)),          # W_full as a row
            ],
            out_specs=(
                pl.BlockSpec((TB, E), lambda b: (b, 0)),         # weighted encoding
                pl.BlockSpec((TB, P), lambda b: (b, 0)),         # alpha, lane-dense
            ),
        ),
        compiler_params=pltpu.CompilerParams(
            dimension_semantics=("parallel",),          # independent over batch tiles
            vmem_limit_bytes=32 * 1024 * 1024,          # safe on v5e/v6e/v7x
        ),
        cost_estimate=cost,
    )(encoder_out, decoder_hidden, we_t, be, wd_t, bd, wf_row)
    return awe, alpha


if __name__ == "__main__":
    # encoder_dim = 32, decoder_dim = 32, attention_dim = 32, num_pixels = 16, batch = 16
    B, P, E, D, A = 16, 16, 32, 32, 32

    key = jax.random.PRNGKey(0)
    k1, k2, k3, k4, k5, k6, k7, k8 = jax.random.split(key, 8)

    encoder_out = jax.random.normal(k1, (B, P, E), dtype=jnp.float32)
    decoder_hidden = jax.random.normal(k2, (B, D), dtype=jnp.float32)

    def linear_init(kw, kb, fan_in, fan_out):
        bound = 1.0 / float(fan_in) ** 0.5
        w = jax.random.uniform(kw, (fan_out, fan_in), minval=-bound, maxval=bound,
                               dtype=jnp.float32)
        b = jax.random.uniform(kb, (fan_out,), minval=-bound, maxval=bound,
                               dtype=jnp.float32)
        return w, b

    We, be = linear_init(k3, k4, E, A)   # encoder_att
    Wd, bd = linear_init(k5, k6, D, A)   # decoder_att
    Wf, bf = linear_init(k7, k8, A, 1)   # full_att (bias cancels in softmax -> not passed)

    params = (We.T, be.reshape(1, A), Wd.T, bd.reshape(1, A), Wf.reshape(1, A))

    awe, alpha = attention_forward(encoder_out, decoder_hidden, params, tb=8)
    jax.block_until_ready((awe, alpha))

    # pure-JAX reference of the PyTorch forward (including b_full, which cancels)
    att1 = encoder_out @ We.T + be
    att2 = decoder_hidden @ Wd.T + bd
    att = (jnp.maximum(att1 + att2[:, None, :], 0.0) @ Wf.T + bf)[..., 0]
    alpha_ref = jax.nn.softmax(att, axis=1)
    awe_ref = jnp.sum(encoder_out * alpha_ref[..., None], axis=1)

    assert alpha.shape == (B, P) and awe.shape == (B, E)
    assert jnp.allclose(alpha, alpha_ref, atol=1e-5), "alpha mismatch"
    assert jnp.allclose(awe, awe_ref, atol=1e-5), "weighted encoding mismatch"
    print("KERNEL_OK")
</pallas_src>

<mosaic_0001>
module attributes {stable_mosaic.version = 11 : i64} {
  func.func @attention_kernel(%arg0: i32, %arg1: memref<8x16x32xf32, #tpu.memory_space<vmem>>, %arg2: memref<8x32xf32, #tpu.memory_space<vmem>>, %arg3: memref<32x32xf32, #tpu.memory_space<vmem>>, %arg4: memref<1x32xf32, #tpu.memory_space<vmem>>, %arg5: memref<32x32xf32, #tpu.memory_space<vmem>>, %arg6: memref<1x32xf32, #tpu.memory_space<vmem>>, %arg7: memref<1x32xf32, #tpu.memory_space<vmem>>, %arg8: memref<8x32xf32, #tpu.memory_space<vmem>>, %arg9: memref<8x16xf32, #tpu.memory_space<vmem>>) attributes {dimension_semantics = [#tpu.dimension_semantics<parallel>], iteration_bounds = array<i64: 2>, scalar_prefetch = 0 : i64, scratch_operands = 0 : i64, tpu.core_type = #tpu.core_type<tc>, window_params = [{transform_indices = @transform_0, window_bounds = array<i64: 8, 16, 32>}, {transform_indices = @transform_1, window_bounds = array<i64: 8, 32>}, {pipeline_mode = #tpu.pipeline_mode<synchronous>, transform_indices = @transform_2, window_bounds = array<i64: 32, 32>}, {pipeline_mode = #tpu.pipeline_mode<synchronous>, transform_indices = @transform_3, window_bounds = array<i64: 1, 32>}, {pipeline_mode = #tpu.pipeline_mode<synchronous>, transform_indices = @transform_4, window_bounds = array<i64: 32, 32>}, {pipeline_mode = #tpu.pipeline_mode<synchronous>, transform_indices = @transform_5, window_bounds = array<i64: 1, 32>}, {pipeline_mode = #tpu.pipeline_mode<synchronous>, transform_indices = @transform_6, window_bounds = array<i64: 1, 32>}, {transform_indices = @transform_7, window_bounds = array<i64: 8, 32>}, {transform_indices = @transform_8, window_bounds = array<i64: 8, 16>}]} {
    %c0 = arith.constant 0 : index
    %c0_0 = arith.constant 0 : index
    %c0_1 = arith.constant 0 : index
    %0 = vector.load %arg1[%c0, %c0_0, %c0_1] : memref<8x16x32xf32, #tpu.memory_space<vmem>>, vector<8x16x32xf32>
    %1 = vector.shape_cast %0 : vector<8x16x32xf32> to vector<128x32xf32>
    %c0_2 = arith.constant 0 : index
    %c0_3 = arith.constant 0 : index
    %2 = vector.load %arg3[%c0_2, %c0_3] : memref<32x32xf32, #tpu.memory_space<vmem>>, vector<32x32xf32>
    %cst = arith.constant dense<0.000000e+00> : vector<128x32xf32>
    %3 = tpu.matmul %1, %2, %cst {dimension_numbers = #tpu.dot_dimension_numbers<[1], [0], [0], [1], [0, 0, 1, 1], [], []>} : vector<128x32xf32>, vector<32x32xf32>, vector<128x32xf32> -> vector<128x32xf32>
    %c0_4 = arith.constant 0 : index
    %c0_5 = arith.constant 0 : index
    %4 = vector.load %arg4[%c0_4, %c0_5] : memref<1x32xf32, #tpu.memory_space<vmem>>, vector<1x32xf32>
    %5 = vector.broadcast %4 : vector<1x32xf32> to vector<128x32xf32>
    %6 = arith.addf %3, %5 : vector<128x32xf32>
    %c0_6 = arith.constant 0 : index
    %c0_7 = arith.constant 0 : index
    %7 = vector.load %arg2[%c0_6, %c0_7] : memref<8x32xf32, #tpu.memory_space<vmem>>, vector<8x32xf32>
    %c0_8 = arith.constant 0 : index
    %c0_9 = arith.constant 0 : index
    %8 = vector.load %arg5[%c0_8, %c0_9] : memref<32x32xf32, #tpu.memory_space<vmem>>, vector<32x32xf32>
    %cst_10 = arith.constant dense<0.000000e+00> : vector<8x32xf32>
    %9 = tpu.matmul %7, %8, %cst_10 {dimension_numbers = #tpu.dot_dimension_numbers<[1], [0], [0], [1], [0, 0, 1, 1], [], []>} : vector<8x32xf32>, vector<32x32xf32>, vector<8x32xf32> -> vector<8x32xf32>
    %c0_11 = arith.constant 0 : index
    %c0_12 = arith.constant 0 : index
    %10 = vector.load %arg6[%c0_11, %c0_12] : memref<1x32xf32, #tpu.memory_space<vmem>>, vector<1x32xf32>
    %11 = vector.broadcast %10 : vector<1x32xf32> to vector<8x32xf32>
    %12 = arith.addf %9, %11 : vector<8x32xf32>
    %13 = vector.shape_cast %6 : vector<128x32xf32> to vector<8x16x32xf32>
    %14 = vector.shape_cast %12 : vector<8x32xf32> to vector<8x1x32xf32>
    %15 = vector.broadcast %14 : vector<8x1x32xf32> to vector<8x16x32xf32>
    %16 = arith.addf %13, %15 : vector<8x16x32xf32>
    %cst_13 = arith.constant 0.000000e+00 : f32
    %17 = vector.broadcast %cst_13 : f32 to vector<8x16x32xf32>
    %18 = arith.maximumf %16, %17 : vector<8x16x32xf32>
    %c0_14 = arith.constant 0 : index
    %c0_15 = arith.constant 0 : index
    %19 = vector.load %arg7[%c0_14, %c0_15] : memref<1x32xf32, #tpu.memory_space<vmem>>, vector<1x32xf32>
    %20 = vector.shape_cast %19 : vector<1x32xf32> to vector<1x1x32xf32>
    %21 = vector.broadcast %20 : vector<1x1x32xf32> to vector<8x16x32xf32>
    %22 = arith.mulf %18, %21 : vector<8x16x32xf32>
    %cst_16 = arith.constant dense<0.000000e+00> : vector<8x16xf32>
    %23 = vector.multi_reduction <add>, %22, %cst_16 [2] : vector<8x16x32xf32> to vector<8x16xf32>
    %cst_17 = arith.constant dense<0xFF800000> : vector<8xf32>
    %24 = vector.multi_reduction <maximumf>, %23, %cst_17 [1] : vector<8x16xf32> to vector<8xf32>
    %25 = vector.shape_cast %24 : vector<8xf32> to vector<8x1xf32>
    %26 = vector.broadcast %25 : vector<8x1xf32> to vector<8x16xf32>
    %27 = arith.subf %23, %26 : vector<8x16xf32>
    %28 = math.exp %27 : vector<8x16xf32>
    %cst_18 = arith.constant dense<0.000000e+00> : vector<8xf32>
    %29 = vector.multi_reduction <add>, %28, %cst_18 [1] : vector<8x16xf32> to vector<8xf32>
    %30 = vector.shape_cast %29 : vector<8xf32> to vector<8x1xf32>
    %31 = tpu.reciprocal %30 : vector<8x1xf32> -> vector<8x1xf32>
    %32 = vector.broadcast %31 : vector<8x1xf32> to vector<8x16xf32>
    %33 = arith.mulf %28, %32 : vector<8x16xf32>
    %c0_19 = arith.constant 0 : index
    %c0_20 = arith.constant 0 : index
    %34 = vector.load %arg9[%c0_19, %c0_20] : memref<8x16xf32, #tpu.memory_space<vmem>>, vector<8x16xf32>
    tpu.vector_store %arg9[%c0_19, %c0_20], %33 {strides = array<i32>} : memref<8x16xf32, #tpu.memory_space<vmem>>, vector<8x16xf32>,
    %35 = vector.shape_cast %33 : vector<8x16xf32> to vector<8x16x1xf32>
    %36 = vector.broadcast %35 : vector<8x16x1xf32> to vector<8x16x32xf32>
    %37 = arith.mulf %0, %36 : vector<8x16x32xf32>
    %cst_21 = arith.constant dense<0.000000e+00> : vector<8x32xf32>
    %38 = vector.multi_reduction <add>, %37, %cst_21 [1] : vector<8x16x32xf32> to vector<8x32xf32>
    %c0_22 = arith.constant 0 : index
    %c0_23 = arith.constant 0 : index
    %39 = vector.load %arg8[%c0_22, %c0_23] : memref<8x32xf32, #tpu.memory_space<vmem>>, vector<8x32xf32>
    tpu.vector_store %arg8[%c0_22, %c0_23], %38 {strides = array<i32>} : memref<8x32xf32, #tpu.memory_space<vmem>>, vector<8x32xf32>,
    return
  }
  func.func @transform_0(%arg0: i32) -> (i32, i32, i32) {
    %c0_i32 = arith.constant 0 : i32
    %c0_i32_0 = arith.constant 0 : i32
    %c0_i32_1 = arith.constant 0 : i32
    return %arg0, %c0_i32, %c0_i32_0 : i32, i32, i32
  }
  func.func @transform_1(%arg0: i32) -> (i32, i32) {
    %c0_i32 = arith.constant 0 : i32
    %c0_i32_0 = arith.constant 0 : i32
    return %arg0, %c0_i32 : i32, i32
  }
  func.func @transform_2(%arg0: i32) -> (i32, i32) {
    %c0_i32 = arith.constant 0 : i32
    %c0_i32_0 = arith.constant 0 : i32
    %c0_i32_1 = arith.constant 0 : i32
    return %c0_i32, %c0_i32_0 : i32, i32
  }
  func.func @transform_3(%arg0: i32) -> (i32, i32) {
    %c0_i32 = arith.constant 0 : i32
    %c0_i32_0 = arith.constant 0 : i32
    %c0_i32_1 = arith.constant 0 : i32
    return %c0_i32, %c0_i32_0 : i32, i32
  }
  func.func @transform_4(%arg0: i32) -> (i32, i32) {
    %c0_i32 = arith.constant 0 : i32
    %c0_i32_0 = arith.constant 0 : i32
    %c0_i32_1 = arith.constant 0 : i32
    return %c0_i32, %c0_i32_0 : i32, i32
  }
  func.func @transform_5(%arg0: i32) -> (i32, i32) {
    %c0_i32 = arith.constant 0 : i32
    %c0_i32_0 = arith.constant 0 : i32
    %c0_i32_1 = arith.constant 0 : i32
    return %c0_i32, %c0_i32_0 : i32, i32
  }
  func.func @transform_6(%arg0: i32) -> (i32, i32) {
    %c0_i32 = arith.constant 0 : i32
    %c0_i32_0 = arith.constant 0 : i32
    %c0_i32_1 = arith.constant 0 : i32
    return %c0_i32, %c0_i32_0 : i32, i32
  }
  func.func @transform_7(%arg0: i32) -> (i32, i32) {
    %c0_i32 = arith.constant 0 : i32
    %c0_i32_0 = arith.constant 0 : i32
    return %arg0, %c0_i32 : i32, i32
  }
  func.func @transform_8(%arg0: i32) -> (i32, i32) {
    %c0_i32 = arith.constant 0 : i32
    %c0_i32_0 = arith.constant 0 : i32
    return %arg0, %c0_i32 : i32, i32
  }
}

</mosaic_0001>

<llo_original>
// kernel: tpu_custom_call.1
$region0: #{tpu_custom_call.1}
  #allocation0 [shape = 'u32[]', space=smem, size = 0x4, offset = 0x4, fixed_abs, tag = 'smem constant byte address 0x4 - core index']
  #allocation1 [shape = 'u32[72,128]{1,0:T(1,128)}', space=vmem, size = 0x9000, scoped, tag = 'internal scratch']
  %s0 = inlined_call_operand.hbm [shape: f32[16,16,32], index: 0, kind: input, shape index: {}]
  %s1 = inlined_call_operand.hbm [shape: f32[16,32], index: 1, kind: input, shape index: {}]
  %s2 = inlined_call_operand.hbm [shape: f32[32,32], index: 2, kind: input, shape index: {}]
  %s3 = inlined_call_operand.vmem [shape: f32[1,32], index: 3, kind: input, shape index: {}]
  %s4 = inlined_call_operand.hbm [shape: f32[32,32], index: 4, kind: input, shape index: {}]
  %s5 = inlined_call_operand.vmem [shape: f32[1,32], index: 5, kind: input, shape index: {}]
  %s6 = inlined_call_operand.vmem [shape: f32[1,32], index: 6, kind: input, shape index: {}]
  %s7 = inlined_call_operand.hbm [shape: f32[16,32], index: 7, kind: output, shape index: {0}]
  %s8 = inlined_call_operand.hbm [shape: f32[16,16], index: 8, kind: output, shape index: {1}]
  %9 = xla_tuple %s7, %s8
  %s10 = sld [smem:[#allocation0]]
  $region85: #{tpu_custom_call.1} parent=0
    _
  %s12 = ssub.s32 1, %s10
  %s13 = scalar_select 0, %s12, %s10
  $region1: #{tpu_custom_call.1} parent=0
    #allocation2 [shape = 'u8[131072]{0}', space=vmem, size = 0x20000, scoped, tag = 'input window, operand 0']
    #allocation3 [shape = 's32[2]{0}', space=sflag, size = 0x8, scoped, tag = 'scoped memory for tpu_custom_call.1']
    #allocation4 [shape = 's32[2]{0}', space=sflag, size = 0x8, scoped, tag = 'scoped memory for tpu_custom_call.1']
    #allocation5 [shape = 'u8[8192]{0}', space=vmem, size = 0x2000, scoped, tag = 'input window, operand 1']
    #allocation6 [shape = 's32[2]{0}', space=sflag, size = 0x8, scoped, tag = 'scoped memory for tpu_custom_call.1']
    #allocation7 [shape = 'u8[16384]{0}', space=vmem, size = 0x4000, scoped, tag = 'input window, operand 2, single buffered']
    #allocation8 [shape = 'u8[16384]{0}', space=vmem, size = 0x4000, scoped, tag = 'input window, operand 4, single buffered']
    #allocation9 [shape = 's32[1]{0}', space=sflag, size = 0x4, scoped, tag = 'scoped memory for tpu_custom_call.1']
    #allocation10 [shape = 'u8[8192]{0}', space=vmem, size = 0x2000, scoped, tag = 'output window, operand 0']
    #allocation11 [shape = 'u8[8192]{0}', space=vmem, size = 0x2000, scoped, tag = 'output window, operand 1']
    #allocation12 [shape = 's32[2]{0}', space=sflag, size = 0x8, scoped, tag = 'scoped memory for tpu_custom_call.1']
    %14 = vsyncpa [#allocation3], 0
    %s15 = scalar_lea.sflag [#allocation3], 1
    %16 = vsyncpa %s15, 0
    %17 = vsyncpa [#allocation6], 0
    %s18 = scalar_lea.sflag [#allocation6], 1
    %19 = vsyncpa %s18, 0
    %20 = vsyncpa [#allocation9], 0
    %21 = vsyncpa [#allocation4], 0
    %s22 = scalar_lea.sflag [#allocation4], 1
    %23 = vsyncpa %s22, 0
    %24 = vsyncpa [#allocation12], 0
    %s25 = scalar_lea.sflag [#allocation12], 1
    %26 = vsyncpa %s25, 0
    loop: start=0, step=1, limit=4
    $region2: #{tpu_custom_call.1} parent=1 // loop_pre_header
      _
    $region3: #{tpu_custom_call.1} parent=1 // loop_header
      %s28 = sphi 0, %s32
      %p29 = scmp.ge.s32.totalorder %s28, 4
      %s38 = sphi 0, %s40
      %s41 = sphi 0, %s38
      %s42 = sphi 0, %s41
      %s58 = sphi 0, %s42
      %s64 = sphi 0, %s66
      %s67 = sphi 0, %s64
      %s68 = sphi 0, %s67
      %s84 = sphi 0, %s68
      %s88 = sphi 0, %s88
      %s90 = sphi 0, %s88
      %s91 = sphi 0, %s90
      %s105 = sphi 0, %s91
      %s109 = sphi 0, %s109
      %s111 = sphi 0, %s109
      %s112 = sphi 0, %s111
      %s126 = sphi 0, %s112
      %s130 = sphi 0, %s130
      %s132 = sphi 0, %s130
      %s133 = sphi 0, %s132
      %s147 = sphi 0, %s133
      %s151 = sphi 0, %s151
      %s153 = sphi 0, %s151
      %s154 = sphi 0, %s153
      %s168 = sphi 0, %s154
      %s172 = sphi 0, %s172
      %s174 = sphi 0, %s172
      %s175 = sphi 0, %s174
      %s189 = sphi 0, %s175
      %s195 = sphi 0, %s197
      %s198 = sphi 0, %s195
      %s199 = sphi 0, %s198
      %s215 = sphi 0, %s199
      %s221 = sphi 0, %s223
      %s224 = sphi 0, %s221
      %s225 = sphi 0, %s224
      %s241 = sphi 0, %s225
    $region4: #{tpu_custom_call.1} parent=1 // loop_header_branch
      %31 = sbr.rel (%p29) target = $region8
    $region5: #{tpu_custom_call.1} parent=1 // loop_body
      %s33 = ssub.s32 %s28, 1
      %s34 = ssub.s32 %s28, 2
      %s35 = sadd.s32 %s28, 1
      %s36 = ssub.s32 %s28, %s35
      %p37 = scmp.eq.s32.totalorder %s36, 0
      %s39 = sadd.s32 %s38, 1
      %s40 = scalar_select %p37, %s38, %s39
      %p43 = pneg %p37
      %p44 = scmp.eq.s32.totalorder %s28, 1
      %p45 = por %p43, %p44
      %p46 = scmp.ne.s32.totalorder %s38, %s41
      %p47 = scmp.eq.s32.totalorder %s28, 0
      %p48 = por %p46, %p47
      %p49 = scmp.ne.s32.totalorder %s38, %s41
      %p50 = scmp.eq.s32.totalorder %s33, 1
      %p51 = por %p49, %p50
      %p52 = scmp.ne.s32.totalorder %s41, %s42
      %p53 = scmp.eq.s32.totalorder %s33, 0
      %p54 = por %p52, %p53
      %p55 = scmp.ne.s32.totalorder %s41, %s42
      %p56 = scmp.eq.s32.totalorder %s34, 1
      %p57 = por %p55, %p56
      %p59 = scmp.ne.s32.totalorder %s42, %s58
      %p60 = scmp.eq.s32.totalorder %s34, 0
      %p61 = por %p59, %p60
      %s62 = ssub.s32 %s28, %s35
      %p63 = scmp.eq.s32.totalorder %s62, 0
      %s65 = sadd.s32 %s64, 1
      %s66 = scalar_select %p63, %s64, %s65
      %p69 = pneg %p63
      %p70 = scmp.eq.s32.totalorder %s28, 1
      %p71 = por %p69, %p70
      %p72 = scmp.ne.s32.totalorder %s64, %s67
      %p73 = scmp.eq.s32.totalorder %s28, 0
      %p74 = por %p72, %p73
      %p75 = scmp.ne.s32.totalorder %s64, %s67
      %p76 = scmp.eq.s32.totalorder %s33, 1
      %p77 = por %p75, %p76
      %p78 = scmp.ne.s32.totalorder %s67, %s68
      %p79 = scmp.eq.s32.totalorder %s33, 0
      %p80 = por %p78, %p79
      %p81 = scmp.ne.s32.totalorder %s67, %s68
      %p82 = scmp.eq.s32.totalorder %s34, 1
      %p83 = por %p81, %p82
      %p85 = scmp.ne.s32.totalorder %s68, %s84
      %p86 = scmp.eq.s32.totalorder %s34, 0
      %p87 = por %p85, %p86
      %s89 = sadd.s32 %s88, 1
      %p92 = scmp.eq.s32.totalorder %s28, 1
      %p93 = scmp.ne.s32.totalorder %s88, %s90
      %p94 = scmp.eq.s32.totalorder %s28, 0
      %p95 = por %p93, %p94
      %p96 = scmp.ne.s32.totalorder %s88, %s90
      %p97 = scmp.eq.s32.totalorder %s33, 1
      %p98 = por %p96, %p97
      %p99 = scmp.ne.s32.totalorder %s90, %s91
      %p100 = scmp.eq.s32.totalorder %s33, 0
      %p101 = por %p99, %p100
      %p102 = scmp.ne.s32.totalorder %s90, %s91
      %p103 = scmp.eq.s32.totalorder %s34, 1
      %p104 = por %p102, %p103
      %p106 = scmp.ne.s32.totalorder %s91, %s105
      %p107 = scmp.eq.s32.totalorder %s34, 0
      %p108 = por %p106, %p107
      %s110 = sadd.s32 %s109, 1
      %p113 = scmp.eq.s32.totalorder %s28, 1
      %p114 = scmp.ne.s32.totalorder %s109, %s111
      %p115 = scmp.eq.s32.totalorder %s28, 0
      %p116 = por %p114, %p115
      %p117 = scmp.ne.s32.totalorder %s109, %s111
      %p118 = scmp.eq.s32.totalorder %s33, 1
      %p119 = por %p117, %p118
      %p120 = scmp.ne.s32.totalorder %s111, %s112
      %p121 = scmp.eq.s32.totalorder %s33, 0
      %p122 = por %p120, %p121
      %p123 = scmp.ne.s32.totalorder %s111, %s112
      %p124 = scmp.eq.s32.totalorder %s34, 1
      %p125 = por %p123, %p124
      %p127 = scmp.ne.s32.totalorder %s112, %s126
      %p128 = scmp.eq.s32.totalorder %s34, 0
      %p129 = por %p127, %p128
      %s131 = sadd.s32 %s130, 1
      %p134 = scmp.eq.s32.totalorder %s28, 1
      %p135 = scmp.ne.s32.totalorder %s130, %s132
      %p136 = scmp.eq.s32.totalorder %s28, 0
      %p137 = por %p135, %p136
      %p138 = scmp.ne.s32.totalorder %s130, %s132
      %p139 = scmp.eq.s32.totalorder %s33, 1
      %p140 = por %p138, %p139
      %p141 = scmp.ne.s32.totalorder %s132, %s133
      %p142 = scmp.eq.s32.totalorder %s33, 0
      %p143 = por %p141, %p142
      %p144 = scmp.ne.s32.totalorder %s132, %s133
      %p145 = scmp.eq.s32.totalorder %s34, 1
      %p146 = por %p144, %p145
      %p148 = scmp.ne.s32.totalorder %s133, %s147
      %p149 = scmp.eq.s32.totalorder %s34, 0
      %p150 = por %p148, %p149
      %s152 = sadd.s32 %s151, 1
      %p155 = scmp.eq.s32.totalorder %s28, 1
      %p156 = scmp.ne.s32.totalorder %s151, %s153
      %p157 = scmp.eq.s32.totalorder %s28, 0
      %p158 = por %p156, %p157
      %p159 = scmp.ne.s32.totalorder %s151, %s153
      %p160 = scmp.eq.s32.totalorder %s33, 1
      %p161 = por %p159, %p160
      %p162 = scmp.ne.s32.totalorder %s153, %s154
      %p163 = scmp.eq.s32.totalorder %s33, 0
      %p164 = por %p162, %p163
      %p165 = scmp.ne.s32.totalorder %s153, %s154
      %p166 = scmp.eq.s32.totalorder %s34, 1
      %p167 = por %p165, %p166
      %p169 = scmp.ne.s32.totalorder %s154, %s168
      %p170 = scmp.eq.s32.totalorder %s34, 0
      %p171 = por %p169, %p170
      %s173 = sadd.s32 %s172, 1
      %p176 = scmp.eq.s32.totalorder %s28, 1
      %p177 = scmp.ne.s32.totalorder %s172, %s174
      %p178 = scmp.eq.s32.totalorder %s28, 0
      %p179 = por %p177, %p178
      %p180 = scmp.ne.s32.totalorder %s172, %s174
      %p181 = scmp.eq.s32.totalorder %s33, 1
      %p182 = por %p180, %p181
      %p183 = scmp.ne.s32.totalorder %s174, %s175
      %p184 = scmp.eq.s32.totalorder %s33, 0
      %p185 = por %p183, %p184
      %p186 = scmp.ne.s32.totalorder %s174, %s175
      %p187 = scmp.eq.s32.totalorder %s34, 1
      %p188 = por %p186, %p187
      %p190 = scmp.ne.s32.totalorder %s175, %s189
      %p191 = scmp.eq.s32.totalorder %s34, 0
      %p192 = por %p190, %p191
      %s193 = ssub.s32 %s28, %s35
      %p194 = scmp.eq.s32.totalorder %s193, 0
      %s196 = sadd.s32 %s195, 1
      %s197 = scalar_select %p194, %s195, %s196
      %p200 = pneg %p194
      %p201 = scmp.eq.s32.totalorder %s28, 1
      %p202 = por %p200, %p201
      %p203 = scmp.ne.s32.totalorder %s195, %s198
      %p204 = scmp.eq.s32.totalorder %s28, 0
      %p205 = por %p203, %p204
      %p206 = scmp.ne.s32.totalorder %s195, %s198
      %p207 = scmp.eq.s32.totalorder %s33, 1
      %p208 = por %p206, %p207
      %p209 = scmp.ne.s32.totalorder %s198, %s199
      %p210 = scmp.eq.s32.totalorder %s33, 0
      %p211 = por %p209, %p210
      %p212 = scmp.ne.s32.totalorder %s198, %s199
      %p213 = scmp.eq.s32.totalorder %s34, 1
      %p214 = por %p212, %p213
      %p216 = scmp.ne.s32.totalorder %s199, %s215
      %p217 = scmp.eq.s32.totalorder %s34, 0
      %p218 = por %p216, %p217
      %s219 = ssub.s32 %s28, %s35
      %p220 = scmp.eq.s32.totalorder %s219, 0
      %s222 = sadd.s32 %s221, 1
      %s223 = scalar_select %p220, %s221, %s222
      %p226 = pneg %p220
      %p227 = scmp.eq.s32.totalorder %s28, 1
      %p228 = por %p226, %p227
      %p229 = scmp.ne.s32.totalorder %s221, %s224
      %p230 = scmp.eq.s32.totalorder %s28, 0
      %p231 = por %p229, %p230
      %p232 = scmp.ne.s32.totalorder %s221, %s224
      %p233 = scmp.eq.s32.totalorder %s33, 1
      %p234 = por %p232, %p233
      %p235 = scmp.ne.s32.totalorder %s224, %s225
      %p236 = scmp.eq.s32.totalorder %s33, 0
      %p237 = por %p235, %p236
      %p238 = scmp.ne.s32.totalorder %s224, %s225
      %p239 = scmp.eq.s32.totalorder %s34, 1
      %p240 = por %p238, %p239
      %p242 = scmp.ne.s32.totalorder %s225, %s241
      %p243 = scmp.eq.s32.totalorder %s34, 0
      %p244 = por %p242, %p243
      %p245 = scmp.le.s32.totalorder 1, %s28
      %p246 = scmp.lt.s32.totalorder %s28, 3
      %p247 = pnand %p245, %p246
      %p248 = pneg %p247
      // Predicated region
      $region9: #{tpu_custom_call.1} parent=5 // pred_check
        _
      $region10: #{tpu_custom_call.1} parent=5 // pred_check_branch
        %250 = sbr.rel (%p247) target = $region12
      $region11: #{tpu_custom_call.1} parent=5 // pred_region
        %s251 = ssub.s32 %s28, 1
        // Predicated region
        $region13: #{tpu_custom_call.1} parent=11 // pred_check
          %p252 = pneg %p101
        $region14: #{tpu_custom_call.1} parent=11 // pred_check_branch
          %254 = sbr.rel (%p252) target = $region16
        $region15: #{tpu_custom_call.1} parent=11 // pred_region
          %256 = vsyncadd [#allocation6], 0
          %s257 = sshll.u32 %s2, 4
          %s258 = int_to_ptr.hbm [resolvable:$true] %s257
          %s259 = sshll.u32 [#allocation7], 4
          %s260 = int_to_ptr.vmem [resolvable:$true] %s259
          %265 = dma.hbm_to_vmem [thread:$0]  %s258, 512, %s260, [#allocation6], 128, 128, 8
        $region16: #{tpu_custom_call.1} parent=11 // pred_fallthru
          _
        // Predicated region
        $region17: #{tpu_custom_call.1} parent=11 // pred_check
          %p266 = pneg %p122
        $region18: #{tpu_custom_call.1} parent=11 // pred_check_branch
          %268 = sbr.rel (%p266) target = $region20
        $region19: #{tpu_custom_call.1} parent=11 // pred_region
          _
        $region20: #{tpu_custom_call.1} parent=11 // pred_fallthru
          _
        // Predicated region
        $region21: #{tpu_custom_call.1} parent=11 // pred_check
          %p269 = pneg %p143
        $region22: #{tpu_custom_call.1} parent=11 // pred_check_branch
          %271 = sbr.rel (%p269) target = $region24
        $region23: #{tpu_custom_call.1} parent=11 // pred_region
          %273 = vsyncadd [#allocation9], 0
          %s274 = sshll.u32 %s4, 4
          %s275 = int_to_ptr.hbm [resolvable:$true] %s274
          %s276 = sshll.u32 [#allocation8], 4
          %s277 = int_to_ptr.vmem [resolvable:$true] %s276
          %282 = dma.hbm_to_vmem [thread:$0]  %s275, 512, %s277, [#allocation9], 128, 128, 8
        $region24: #{tpu_custom_call.1} parent=11 // pred_fallthru
          _
        // Predicated region
        $region25: #{tpu_custom_call.1} parent=11 // pred_check
          %p283 = pneg %p164
        $region26: #{tpu_custom_call.1} parent=11 // pred_check_branch
          %285 = sbr.rel (%p283) target = $region28
        $region27: #{tpu_custom_call.1} parent=11 // pred_region
          _
        $region28: #{tpu_custom_call.1} parent=11 // pred_fallthru
          _
        // Predicated region
        $region29: #{tpu_custom_call.1} parent=11 // pred_check
          %p286 = pneg %p185
        $region30: #{tpu_custom_call.1} parent=11 // pred_check_branch
          %288 = sbr.rel (%p286) target = $region32
        $region31: #{tpu_custom_call.1} parent=11 // pred_region
          _
        $region32: #{tpu_custom_call.1} parent=11 // pred_fallthru
          _
      $region12: #{tpu_custom_call.1} parent=5 // pred_fallthru
        _
      %p289 = scmp.lt.s32.totalorder %s28, 2
      // Predicated region
      $region33: #{tpu_custom_call.1} parent=5 // pred_check
        %p290 = pneg %p289
      $region34: #{tpu_custom_call.1} parent=5 // pred_check_branch
        %292 = sbr.rel (%p290) target = $region36
      $region35: #{tpu_custom_call.1} parent=5 // pred_region
        // Predicated region
        $region37: #{tpu_custom_call.1} parent=35 // pred_check
          %p293 = pneg %p48
        $region38: #{tpu_custom_call.1} parent=35 // pred_check_branch
          %295 = sbr.rel (%p293) target = $region40
        $region39: #{tpu_custom_call.1} parent=35 // pred_region
          %s296 = sand.u32 %s38, 1
          %s297 = scalar_lea.sflag [#allocation3], %s296
          %s298 = sand.u32 %s38, 1
          %s299 = smul.addr %s298, 128
          %s300 = scalar_lea.vmem [#allocation2], %s299
          %s301 = smul.u32 8, %s28
          %303 = vsyncadd %s297, 0
          %s304 = smul.addr %s301, 2
          %s305 = smul.addr %s304, 8
          %s306 = scalar_lea.hbm %s0, %s305
          %s307 = sshll.u32 %s306, 4
          %s308 = int_to_ptr.hbm [resolvable:$true] %s307
          %s309 = sshll.u32 %s300, 4
          %s310 = int_to_ptr.vmem [resolvable:$true] %s309
          %315 = dma.hbm_to_vmem [thread:$0]  %s308, 2048, %s310, %s297, 128, 128, 8
        $region40: #{tpu_custom_call.1} parent=35 // pred_fallthru
          _
        // Predicated region
        $region41: #{tpu_custom_call.1} parent=35 // pred_check
          %p316 = pneg %p74
        $region42: #{tpu_custom_call.1} parent=35 // pred_check_branch
          %318 = sbr.rel (%p316) target = $region44
        $region43: #{tpu_custom_call.1} parent=35 // pred_region
          %s319 = sand.u32 %s28, 1
          %s320 = scalar_lea.sflag [#allocation6], %s319
          %s321 = sand.u32 %s64, 1
          %s322 = smul.addr %s321, 8
          %s323 = scalar_lea.vmem [#allocation5], %s322
          %325 = vsyncadd %s320, 0
          %s326 = smul.addr %s28, 8
          %s327 = scalar_lea.hbm %s1, %s326
          %s329 = sshll.u32 %s327, 4
          %s330 = int_to_ptr.hbm [resolvable:$true] %s329
          %s331 = sshll.u32 %s323, 4
          %s332 = int_to_ptr.vmem [resolvable:$true] %s331
          %334 = dma.hbm_to_vmem [thread:$0]  %s330, 128, %s332, %s320
        $region44: #{tpu_custom_call.1} parent=35 // pred_fallthru
          _
      $region36: #{tpu_custom_call.1} parent=5 // pred_fallthru
        _
      %p335 = scmp.le.s32.totalorder 1, %s28
      %p336 = scmp.lt.s32.totalorder %s28, 3
      %p337 = pnand %p335, %p336
      %p338 = pneg %p337
      // Predicated region
      $region45: #{tpu_custom_call.1} parent=5 // pred_check
        _
      $region46: #{tpu_custom_call.1} parent=5 // pred_check_branch
        %340 = sbr.rel (%p337) target = $region48
      $region47: #{tpu_custom_call.1} parent=5 // pred_region
        %s341 = ssub.s32 %s28, 1
        %s342 = sand.u32 %s41, 1
        %s343 = scalar_lea.sflag [#allocation3], %s342
        %s344 = sand.u32 %s41, 1
        %s345 = smul.addr %s344, 128
        %s346 = scalar_lea.vmem [#allocation2], %s345
        // Predicated region
        $region49: #{tpu_custom_call.1} parent=47 // pred_check
          %p347 = pneg %p54
        $region50: #{tpu_custom_call.1} parent=47 // pred_check_branch
          %349 = sbr.rel (%p347) target = $region52
        $region51: #{tpu_custom_call.1} parent=47 // pred_region
          %351 = dma.done %s343, 2048
        $region52: #{tpu_custom_call.1} parent=47 // pred_fallthru
          _
        %s352 = sand.u32 %s33, 1
        %s353 = scalar_lea.sflag [#allocation6], %s352
        %s354 = sand.u32 %s67, 1
        %s355 = smul.addr %s354, 8
        %s356 = scalar_lea.vmem [#allocation5], %s355
        // Predicated region
        $region53: #{tpu_custom_call.1} parent=47 // pred_check
          %p357 = pneg %p80
        $region54: #{tpu_custom_call.1} parent=47 // pred_check_branch
          %359 = sbr.rel (%p357) target = $region56
        $region55: #{tpu_custom_call.1} parent=47 // pred_region
          %361 = dma.done %s353, 128
        $region56: #{tpu_custom_call.1} parent=47 // pred_fallthru
          _
        // Predicated region
        $region57: #{tpu_custom_call.1} parent=47 // pred_check
          %p362 = pneg %p101
        $region58: #{tpu_custom_call.1} parent=47 // pred_check_branch
          %364 = sbr.rel (%p362) target = $region60
        $region59: #{tpu_custom_call.1} parent=47 // pred_region
          %366 = dma.done [#allocation6], 512
        $region60: #{tpu_custom_call.1} parent=47 // pred_fallthru
          _
        // Predicated region
        $region61: #{tpu_custom_call.1} parent=47 // pred_check
          %p367 = pneg %p143
        $region62: #{tpu_custom_call.1} parent=47 // pred_check_branch
          %369 = sbr.rel (%p367) target = $region64
        $region63: #{tpu_custom_call.1} parent=47 // pred_region
          %371 = dma.done [#allocation9], 512
        $region64: #{tpu_custom_call.1} parent=47 // pred_fallthru
          _
        %s372 = sand.u32 %s41, 1
        %s373 = scalar_lea.sflag [#allocation3], %s372
        %s374 = sand.u32 %s41, 1
        %s375 = smul.addr %s374, 128
        %s376 = scalar_lea.vmem [#allocation2], %s375
        %p377 = pneg %p54
        %p378 = pneg %p51
        %s379 = sand.u32 %s33, 1
        %s380 = scalar_lea.sflag [#allocation6], %s379
        %s381 = sand.u32 %s67, 1
        %s382 = smul.addr %s381, 8
        %s383 = scalar_lea.vmem [#allocation5], %s382
        %p384 = pneg %p80
        %p385 = pneg %p77
        %p386 = pneg %p101
        %p387 = pneg %p98
        %p388 = pneg %p122
        %p389 = pneg %p119
        %p390 = pneg %p143
        %p391 = pneg %p140
        %p392 = pneg %p164
        %p393 = pneg %p161
        %p394 = pneg %p185
        %p395 = pneg %p182
        %p396 = pneg %p211
        %p397 = pneg %p208
        %s398 = sand.u32 %s198, 1
        %s399 = scalar_lea.sflag [#allocation4], %s398
        %s400 = sand.u32 %s198, 1
        %s401 = smul.addr %s400, 8
        %s402 = scalar_lea.vmem [#allocation10], %s401
        %p403 = pneg %p237
        %p404 = pneg %p234
        %s405 = sand.u32 %s224, 1
        %s406 = scalar_lea.sflag [#allocation12], %s405
        %s407 = sand.u32 %s224, 1
        %s408 = smul.addr %s407, 8
        %s409 = scalar_lea.vmem [#allocation11], %s408
        %s410 = smul.u32 8, %s33
        %v411 = vld [vmem:[%s346] sm:$0xff]
        %v412 = vld [vmem:[%s346 + $0x8] sm:$0xff]
        %v413 = vld [vmem:[%s346 + $0x10] sm:$0xff]
        %v414 = vld [vmem:[%s346 + $0x18] sm:$0xff]
        %v415 = vld [vmem:[%s346 + $0x20] sm:$0xff]
        %v416 = vld [vmem:[%s346 + $0x28] sm:$0xff]
        %v417 = vld [vmem:[%s346 + $0x30] sm:$0xff]
        %v418 = vld [vmem:[%s346 + $0x38] sm:$0xff]
        %v419 = vld [vmem:[%s346 + $0x40] sm:$0xff]
        %v420 = vld [vmem:[%s346 + $0x48] sm:$0xff]
        %v421 = vld [vmem:[%s346 + $0x50] sm:$0xff]
        %v422 = vld [vmem:[%s346 + $0x58] sm:$0xff]
        %v423 = vld [vmem:[%s346 + $0x60] sm:$0xff]
        %v424 = vld [vmem:[%s346 + $0x68] sm:$0xff]
        %v425 = vld [vmem:[%s346 + $0x70] sm:$0xff]
        %v426 = vld [vmem:[%s346 + $0x78] sm:$0xff]
        %v427 = vld [vmem:[#allocation7] sm:$0xff]
        %v428 = vld [vmem:[#allocation7 + $0x8] sm:$0xff]
        %v429 = vld [vmem:[#allocation7 + $0x10] sm:$0xff]
        %v430 = vld [vmem:[#allocation7 + $0x18] sm:$0xff]
        %v431 = vld [vmem:[%s3] sm:$0x1]
        %v433 = vperm.slane %v431, 0
        %vm435 = vcmask 261120
        %v437 = vsel %vm435, %v411, 0
        %v440 = vsel %vm435, %v412, 0
        %v443 = vsel %vm435, %v413, 0
        %v446 = vsel %vm435, %v414, 0
        %v449 = vsel %vm435, %v415, 0
        %v452 = vsel %vm435, %v416, 0
        %v455 = vsel %vm435, %v417, 0
        %v458 = vsel %vm435, %v418, 0
        %v461 = vsel %vm435, %v419, 0
        %v464 = vsel %vm435, %v420, 0
        %v467 = vsel %vm435, %v421, 0
        %v470 = vsel %vm435, %v422, 0
        %v473 = vsel %vm435, %v423, 0
        %v476 = vsel %vm435, %v424, 0
        %v479 = vsel %vm435, %v425, 0
        %v482 = vsel %vm435, %v426, 0
        %484 = vmatpush.msra.mxu0 0.0
        %485 = vmatpush.msra.mxu0 0.0
        %486 = vmatpush.msra.mxu0 0.0
        %487 = vmatpush.msra.mxu0 0.0
        %488 = vmatpush.msra.mxu0 0.0
        %489 = vmatpush.msra.mxu0 0.0
        %490 = vmatpush.msra.mxu0 0.0
        %491 = vmatpush.msra.mxu0 0.0
        %492 = vmatpush.msra.mxu0 0.0
        %493 = vmatpush.msra.mxu0 0.0
        %494 = vmatpush.msra.mxu0 0.0
        %495 = vmatpush.msra.mxu0 0.0
        %496 = vmatpush.msra.mxu0 %v430
        %497 = vmatpush.msra.mxu0 %v429
        %498 = vmatpush.msra.mxu0 %v428
        %499 = vmatpush.msra.mxu0 %v427
        %500 = vmatmul.f32.gmra.mxu0 %v437
        %v501 = vpop.f32.mrf.mxu0
        %v502 = vadd.f32 %v433, %v501
        %503 = vmatmul.f32.gmra.mxu0 %v440
        %v504 = vpop.f32.mrf.mxu0
        %v505 = vadd.f32 %v433, %v504
        %506 = vmatmul.f32.gmra.mxu0 %v443
        %v507 = vpop.f32.mrf.mxu0
        %v508 = vadd.f32 %v433, %v507
        %509 = vmatmul.f32.gmra.mxu0 %v446
        %v510 = vpop.f32.mrf.mxu0
        %v511 = vadd.f32 %v433, %v510
        %512 = vmatmul.f32.gmra.mxu0 %v449
        %v513 = vpop.f32.mrf.mxu0
        %v514 = vadd.f32 %v433, %v513
        %515 = vmatmul.f32.gmra.mxu0 %v452
        %v516 = vpop.f32.mrf.mxu0
        %v517 = vadd.f32 %v433, %v516
        %518 = vmatmul.f32.gmra.mxu0 %v455
        %v519 = vpop.f32.mrf.mxu0
        %v520 = vadd.f32 %v433, %v519
        %521 = vmatmul.f32.gmra.mxu0 %v458
        %v522 = vpop.f32.mrf.mxu0
        %v523 = vadd.f32 %v433, %v522
        %524 = vmatmul.f32.gmra.mxu0 %v461
        %v525 = vpop.f32.mrf.mxu0
        %v526 = vadd.f32 %v433, %v525
        %527 = vmatmul.f32.gmra.mxu0 %v464
        %v528 = vpop.f32.mrf.mxu0
        %v529 = vadd.f32 %v433, %v528
        %530 = vmatmul.f32.gmra.mxu0 %v467
        %v531 = vpop.f32.mrf.mxu0
        %v532 = vadd.f32 %v433, %v531
        %533 = vmatmul.f32.gmra.mxu0 %v470
        %v534 = vpop.f32.mrf.mxu0
        %v535 = vadd.f32 %v433, %v534
        %536 = vmatmul.f32.gmra.mxu0 %v473
        %v537 = vpop.f32.mrf.mxu0
        %v538 = vadd.f32 %v433, %v537
        %539 = vmatmul.f32.gmra.mxu0 %v476
        %v540 = vpop.f32.mrf.mxu0
        %v541 = vadd.f32 %v433, %v540
        %542 = vmatmul.f32.gmra.mxu0 %v479
        %v543 = vpop.f32.mrf.mxu0
        %v544 = vadd.f32 %v433, %v543
        %545 = vmatmul.f32.gmra.mxu0 %v482
        %v546 = vpop.f32.mrf.mxu0
        %v547 = vadd.f32 %v433, %v546
        %548 = vdwg.mxu0
        %v549 = vld [vmem:[%s356] sm:$0xff]
        %v550 = vld [vmem:[#allocation8] sm:$0xff]
        %v551 = vld [vmem:[#allocation8 + $0x8] sm:$0xff]
        %v552 = vld [vmem:[#allocation8 + $0x10] sm:$0xff]
        %v553 = vld [vmem:[#allocation8 + $0x18] sm:$0xff]
        %v554 = vld [vmem:[%s5] sm:$0x1]
        %v556 = vperm.slane %v554, 0
        %v559 = vsel %vm435, %v549, 0
        %561 = vmatpush.msra.mxu0 0.0
        %562 = vmatpush.msra.mxu0 0.0
        %563 = vmatpush.msra.mxu0 0.0
        %564 = vmatpush.msra.mxu0 0.0
        %565 = vmatpush.msra.mxu0 0.0
        %566 = vmatpush.msra.mxu0 0.0
        %567 = vmatpush.msra.mxu0 0.0
        %568 = vmatpush.msra.mxu0 0.0
        %569 = vmatpush.msra.mxu0 0.0
        %570 = vmatpush.msra.mxu0 0.0
        %571 = vmatpush.msra.mxu0 0.0
        %572 = vmatpush.msra.mxu0 0.0
        %573 = vmatpush.msra.mxu0 %v553
        %574 = vmatpush.msra.mxu0 %v552
        %575 = vmatpush.msra.mxu0 %v551
        %576 = vmatpush.msra.mxu0 %v550
        %577 = vmatmul.f32.gmra.mxu0 %v559
        %v578 = vpop.f32.mrf.mxu0
        %v579 = vadd.f32 %v556, %v578
        %580 = vdwg.mxu0
        %v582 = vrot.slane %v579, 1
        %v583 = vrot.slane %v579, 2
        %v584 = vrot.slane %v579, 3
        %v585 = vrot.slane %v579, 4
        %v586 = vrot.slane %v579, 5
        %v587 = vrot.slane %v579, 6
        %v588 = vrot.slane %v579, 7
        %v589 = vperm.slane %v579, 0
        %v590 = vperm.slane %v582, 0
        %v591 = vperm.slane %v583, 0
        %v592 = vperm.slane %v584, 0
        %v593 = vperm.slane %v585, 0
        %v594 = vperm.slane %v586, 0
        %v595 = vperm.slane %v587, 0
        %v596 = vperm.slane %v588, 0
        %v605 = vadd.f32 %v502, %v589
        %v606 = vadd.f32 %v505, %v589
        %v607 = vadd.f32 %v508, %v590
        %v608 = vadd.f32 %v511, %v590
        %v609 = vadd.f32 %v514, %v591
        %v610 = vadd.f32 %v517, %v591
        %v611 = vadd.f32 %v520, %v592
        %v612 = vadd.f32 %v523, %v592
        %v613 = vadd.f32 %v526, %v593
        %v614 = vadd.f32 %v529, %v593
        %v615 = vadd.f32 %v532, %v594
        %v616 = vadd.f32 %v535, %v594
        %v617 = vadd.f32 %v538, %v595
        %v618 = vadd.f32 %v541, %v595
        %v619 = vadd.f32 %v544, %v596
        %v620 = vadd.f32 %v547, %v596
        %v621 = vmax.f32 %v605, 0.0
        %v622 = vmax.f32 %v606, 0.0
        %v623 = vmax.f32 %v607, 0.0
        %v624 = vmax.f32 %v608, 0.0
        %v625 = vmax.f32 %v609, 0.0
        %v626 = vmax.f32 %v610, 0.0
        %v627 = vmax.f32 %v611, 0.0
        %v628 = vmax.f32 %v612, 0.0
        %v629 = vmax.f32 %v613, 0.0
        %v630 = vmax.f32 %v614, 0.0
        %v631 = vmax.f32 %v615, 0.0
        %v632 = vmax.f32 %v616, 0.0
        %v633 = vmax.f32 %v617, 0.0
        %v634 = vmax.f32 %v618, 0.0
        %v635 = vmax.f32 %v619, 0.0
        %v636 = vmax.f32 %v620, 0.0
        %v637 = vld [vmem:[%s6] sm:$0x1]
        %v639 = vperm.slane %v637, 0
        %v641 = vmul.f32 %v621, %v639
        %v642 = vmul.f32 %v622, %v639
        %v643 = vmul.f32 %v623, %v639
        %v644 = vmul.f32 %v624, %v639
        %v645 = vmul.f32 %v625, %v639
        %v646 = vmul.f32 %v626, %v639
        %v647 = vmul.f32 %v627, %v639
        %v648 = vmul.f32 %v628, %v639
        %v649 = vmul.f32 %v629, %v639
        %v650 = vmul.f32 %v630, %v639
        %v651 = vmul.f32 %v631, %v639
        %v652 = vmul.f32 %v632, %v639
        %v653 = vmul.f32 %v633, %v639
        %v654 = vmul.f32 %v634, %v639
        %v655 = vmul.f32 %v635, %v639
        %v656 = vmul.f32 %v636, %v639
        %v657 = vsel %vm435, %v641, 0.0
        %658 = vadd.xlane.f32.xlu0 %v657
        %v659 = vpop.xlane.xlu0 %658
        %v660 = vsel %vm435, %v642, 0.0
        %661 = vadd.xlane.f32.xlu0 %v660
        %v662 = vpop.xlane.xlu0 %661
        %v663 = vsel %vm435, %v643, 0.0
        %664 = vadd.xlane.f32.xlu0 %v663
        %v665 = vpop.xlane.xlu0 %664
        %v666 = vsel %vm435, %v644, 0.0
        %667 = vadd.xlane.f32.xlu0 %v666
        %v668 = vpop.xlane.xlu0 %667
        %v669 = vsel %vm435, %v645, 0.0
        %670 = vadd.xlane.f32.xlu0 %v669
        %v671 = vpop.xlane.xlu0 %670
        %v672 = vsel %vm435, %v646, 0.0
        %673 = vadd.xlane.f32.xlu0 %v672
        %v674 = vpop.xlane.xlu0 %673
        %v675 = vsel %vm435, %v647, 0.0
        %676 = vadd.xlane.f32.xlu0 %v675
        %v677 = vpop.xlane.xlu0 %676
        %v678 = vsel %vm435, %v648, 0.0
        %679 = vadd.xlane.f32.xlu0 %v678
        %v680 = vpop.xlane.xlu0 %679
        %v681 = vsel %vm435, %v649, 0.0
        %682 = vadd.xlane.f32.xlu0 %v681
        %v683 = vpop.xlane.xlu0 %682
        %v684 = vsel %vm435, %v650, 0.0
        %685 = vadd.xlane.f32.xlu0 %v684
        %v686 = vpop.xlane.xlu0 %685
        %v687 = vsel %vm435, %v651, 0.0
        %688 = vadd.xlane.f32.xlu0 %v687
        %v689 = vpop.xlane.xlu0 %688
        %v690 = vsel %vm435, %v652, 0.0
        %691 = vadd.xlane.f32.xlu0 %v690
        %v692 = vpop.xlane.xlu0 %691
        %v693 = vsel %vm435, %v653, 0.0
        %694 = vadd.xlane.f32.xlu0 %v693
        %v695 = vpop.xlane.xlu0 %694
        %v696 = vsel %vm435, %v654, 0.0
        %697 = vadd.xlane.f32.xlu0 %v696
        %v698 = vpop.xlane.xlu0 %697
        %v699 = vsel %vm435, %v655, 0.0
        %700 = vadd.xlane.f32.xlu0 %v699
        %v701 = vpop.xlane.xlu0 %700
        %v702 = vsel %vm435, %v656, 0.0
        %703 = vadd.xlane.f32.xlu0 %v702
        %v704 = vpop.xlane.xlu0 %703
        %v721 = vlaneseq
        %v722 = vand.u32 %v721, 127
        %v723 = vperm.slane %v659, %v722
        %v724 = vadd.s32 %v722, 4294967288
        %v725 = vperm.slane %v662, %v724
        %vm726 = vcmask 130112
        %v727 = vsel %vm726, %v725, %v723
        %v728 = vperm.slane %v665, %v722
        %v729 = vperm.slane %v668, %v724
        %v730 = vsel %vm726, %v729, %v728
        %v731 = vperm.slane %v671, %v722
        %v732 = vperm.slane %v674, %v724
        %v733 = vsel %vm726, %v732, %v731
        %v734 = vperm.slane %v677, %v722
        %v735 = vperm.slane %v680, %v724
        %v736 = vsel %vm726, %v735, %v734
        %v737 = vperm.slane %v683, %v722
        %v738 = vperm.slane %v686, %v724
        %v739 = vsel %vm726, %v738, %v737
        %v740 = vperm.slane %v689, %v722
        %v741 = vperm.slane %v692, %v724
        %v742 = vsel %vm726, %v741, %v740
        %v743 = vperm.slane %v695, %v722
        %v744 = vperm.slane %v698, %v724
        %v745 = vsel %vm726, %v744, %v743
        %v746 = vperm.slane %v701, %v722
        %v747 = vperm.slane %v704, %v724
        %v748 = vsel %vm726, %v747, %v746
        %vm749 = vcmask 1041409
        %v750 = vsel %vm749, %v730, %v727
        %vm751 = vcmask 1042434
        %v752 = vsel %vm751, %v733, %v750
        %vm753 = vcmask 1043459
        %v754 = vsel %vm753, %v736, %v752
        %vm755 = vcmask 1044484
        %v756 = vsel %vm755, %v739, %v754
        %vm757 = vcmask 1045509
        %v758 = vsel %vm757, %v742, %v756
        %vm759 = vcmask 1046534
        %v760 = vsel %vm759, %v745, %v758
        %vm761 = vcmask 1047559
        %v762 = vsel %vm761, %v748, %v760
        %vm764 = vcmask 130048
        %v765 = vsel %vm764, %v762, -inf
        %766 = vmax.xlane.f32.xlu0 %v765
        %v767 = vpop.xlane.xlu0 %766
        %v769 = vperm.slane %v767, 0
        %v770 = vperm.slane %v767, 1
        %v771 = vperm.slane %v767, 2
        %v772 = vperm.slane %v767, 3
        %v773 = vperm.slane %v767, 4
        %v774 = vperm.slane %v767, 5
        %v775 = vperm.slane %v767, 6
        %v776 = vperm.slane %v767, 7
        %v785 = vsub.f32 %v659, %v769
        %v786 = vsub.f32 %v662, %v769
        %v787 = vsub.f32 %v665, %v770
        %v788 = vsub.f32 %v668, %v770
        %v789 = vsub.f32 %v671, %v771
        %v790 = vsub.f32 %v674, %v771
        %v791 = vsub.f32 %v677, %v772
        %v792 = vsub.f32 %v680, %v772
        %v793 = vsub.f32 %v683, %v773
        %v794 = vsub.f32 %v686, %v773
        %v795 = vsub.f32 %v689, %v774
        %v796 = vsub.f32 %v692, %v774
        %v797 = vsub.f32 %v695, %v775
        %v798 = vsub.f32 %v698, %v775
        %v799 = vsub.f32 %v701, %v776
        %v800 = vsub.f32 %v704, %v776
        %v801 = vmul.f32 %v785, 1.442695
        %v802 = vpow.pop %v801
        %v803 = vmul.f32 %v786, 1.442695
        %v804 = vpow.pop %v803
        %v805 = vmul.f32 %v787, 1.442695
        %v806 = vpow.pop %v805
        %v807 = vmul.f32 %v788, 1.442695
        %v808 = vpow.pop %v807
        %v809 = vmul.f32 %v789, 1.442695
        %v810 = vpow.pop %v809
        %v811 = vmul.f32 %v790, 1.442695
        %v812 = vpow.pop %v811
        %v813 = vmul.f32 %v791, 1.442695
        %v814 = vpow.pop %v813
        %v815 = vmul.f32 %v792, 1.442695
        %v816 = vpow.pop %v815
        %v817 = vmul.f32 %v793, 1.442695
        %v818 = vpow.pop %v817
        %v819 = vmul.f32 %v794, 1.442695
        %v820 = vpow.pop %v819
        %v821 = vmul.f32 %v795, 1.442695
        %v822 = vpow.pop %v821
        %v823 = vmul.f32 %v796, 1.442695
        %v824 = vpow.pop %v823
        %v825 = vmul.f32 %v797, 1.442695
        %v826 = vpow.pop %v825
        %v827 = vmul.f32 %v798, 1.442695
        %v828 = vpow.pop %v827
        %v829 = vmul.f32 %v799, 1.442695
        %v830 = vpow.pop %v829
        %v831 = vmul.f32 %v800, 1.442695
        %v832 = vpow.pop %v831
        %849 = vset.pattern.permute.xlu0 0
        %850 = vperm.xlu0 %849, %v802
        %v851 = vpop.permute.xlu0 %850
        %852 = vset.pattern.permute.xlu0 0
        %853 = vperm.xlu0 %852, %v804
        %v854 = vpop.permute.xlu0 %853
        %855 = vset.pattern.permute.xlu0 0
        %856 = vperm.xlu0 %855, %v806
        %v857 = vpop.permute.xlu0 %856
        %858 = vset.pattern.permute.xlu0 0
        %859 = vperm.xlu0 %858, %v808
        %v860 = vpop.permute.xlu0 %859
        %861 = vset.pattern.permute.xlu0 0
        %862 = vperm.xlu0 %861, %v810
        %v863 = vpop.permute.xlu0 %862
        %864 = vset.pattern.permute.xlu0 0
        %865 = vperm.xlu0 %864, %v812
        %v866 = vpop.permute.xlu0 %865
        %867 = vset.pattern.permute.xlu0 0
        %868 = vperm.xlu0 %867, %v814
        %v869 = vpop.permute.xlu0 %868
        %870 = vset.pattern.permute.xlu0 0
        %871 = vperm.xlu0 %870, %v816
        %v872 = vpop.permute.xlu0 %871
        %873 = vset.pattern.permute.xlu0 0
        %874 = vperm.xlu0 %873, %v818
        %v875 = vpop.permute.xlu0 %874
        %876 = vset.pattern.permute.xlu0 0
        %877 = vperm.xlu0 %876, %v820
        %v878 = vpop.permute.xlu0 %877
        %879 = vset.pattern.permute.xlu0 0
        %880 = vperm.xlu0 %879, %v822
        %v881 = vpop.permute.xlu0 %880
        %882 = vset.pattern.permute.xlu0 0
        %883 = vperm.xlu0 %882, %v824
        %v884 = vpop.permute.xlu0 %883
        %885 = vset.pattern.permute.xlu0 0
        %886 = vperm.xlu0 %885, %v826
        %v887 = vpop.permute.xlu0 %886
        %888 = vset.pattern.permute.xlu0 0
        %889 = vperm.xlu0 %888, %v828
        %v890 = vpop.permute.xlu0 %889
        %891 = vset.pattern.permute.xlu0 0
        %892 = vperm.xlu0 %891, %v830
        %v893 = vpop.permute.xlu0 %892
        %894 = vset.pattern.permute.xlu0 0
        %895 = vperm.xlu0 %894, %v832
        %v896 = vpop.permute.xlu0 %895
        %v897 = vperm.slane %v851, %v722
        %v898 = vperm.slane %v854, %v724
        %v899 = vsel %vm726, %v898, %v897
        %v900 = vperm.slane %v857, %v722
        %v901 = vperm.slane %v860, %v724
        %v902 = vsel %vm726, %v901, %v900
        %v903 = vperm.slane %v863, %v722
        %v904 = vperm.slane %v866, %v724
        %v905 = vsel %vm726, %v904, %v903
        %v906 = vperm.slane %v869, %v722
        %v907 = vperm.slane %v872, %v724
        %v908 = vsel %vm726, %v907, %v906
        %v909 = vperm.slane %v875, %v722
        %v910 = vperm.slane %v878, %v724
        %v911 = vsel %vm726, %v910, %v909
        %v912 = vperm.slane %v881, %v722
        %v913 = vperm.slane %v884, %v724
        %v914 = vsel %vm726, %v913, %v912
        %v915 = vperm.slane %v887, %v722
        %v916 = vperm.slane %v890, %v724
        %v917 = vsel %vm726, %v916, %v915
        %v918 = vperm.slane %v893, %v722
        %v919 = vperm.slane %v896, %v724
        %v920 = vsel %vm726, %v919, %v918
        %v921 = vsel %vm749, %v902, %v899
        %v922 = vsel %vm751, %v905, %v921
        %v923 = vsel %vm753, %v908, %v922
        %v924 = vsel %vm755, %v911, %v923
        %v925 = vsel %vm757, %v914, %v924
        %v926 = vsel %vm759, %v917, %v925
        %v927 = vsel %vm761, %v920, %v926
        %v929 = vsel %vm764, %v927, 0.0
        %930 = vadd.xlane.f32.xlu0 %v929
        %v931 = vpop.xlane.xlu0 %930
        %v932 = vrcp.pop %v931
        %v933 = vmul.f32 %v931, %v932
        %v934 = vsub.f32 1.0, %v933
        %v935 = vmul.f32 %v932, %v934
        %v936 = vadd.f32 %v932, %v935
        %vm937 = vweird.f32 %v931
        %vm938 = vweird.f32 %v932
        %vm939 = vmor %vm937, %vm938
        %v940 = vsel %vm939, %v932, %v936
        %v941 = vand.u32 2147483647, %v931
        %vm942 = vcmp.eq.f32.partialorder %v941, 8.507059e+37
        %v943 = vand.u32 %v931, 2147483648
        %v944 = vor.u32 1.1754944e-38, %v943
        %v945 = vsel %vm942, %v944, %v940
        %v947 = vperm.slane %v945, 0
        %v948 = vperm.slane %v945, 1
        %v949 = vperm.slane %v945, 2
        %v950 = vperm.slane %v945, 3
        %v951 = vperm.slane %v945, 4
        %v952 = vperm.slane %v945, 5
        %v953 = vperm.slane %v945, 6
        %v954 = vperm.slane %v945, 7
        %v963 = vmul.f32 %v802, %v947
        %v964 = vmul.f32 %v804, %v947
        %v965 = vmul.f32 %v806, %v948
        %v966 = vmul.f32 %v808, %v948
        %v967 = vmul.f32 %v810, %v949
        %v968 = vmul.f32 %v812, %v949
        %v969 = vmul.f32 %v814, %v950
        %v970 = vmul.f32 %v816, %v950
        %v971 = vmul.f32 %v818, %v951
        %v972 = vmul.f32 %v820, %v951
        %v973 = vmul.f32 %v822, %v952
        %v974 = vmul.f32 %v824, %v952
        %v975 = vmul.f32 %v826, %v953
        %v976 = vmul.f32 %v828, %v953
        %v977 = vmul.f32 %v830, %v954
        %v978 = vmul.f32 %v832, %v954
        %995 = vset.pattern.permute.xlu0 0
        %996 = vperm.xlu0 %995, %v963
        %v997 = vpop.permute.xlu0 %996
        %998 = vset.pattern.permute.xlu0 0
        %999 = vperm.xlu0 %998, %v964
        %v1000 = vpop.permute.xlu0 %999
        %1001 = vset.pattern.permute.xlu0 0
        %1002 = vperm.xlu0 %1001, %v965
        %v1003 = vpop.permute.xlu0 %1002
        %1004 = vset.pattern.permute.xlu0 0
        %1005 = vperm.xlu0 %1004, %v966
        %v1006 = vpop.permute.xlu0 %1005
        %1007 = vset.pattern.permute.xlu0 0
        %1008 = vperm.xlu0 %1007, %v967
        %v1009 = vpop.permute.xlu0 %1008
        %1010 = vset.pattern.permute.xlu0 0
        %1011 = vperm.xlu0 %1010, %v968
        %v1012 = vpop.permute.xlu0 %1011
        %1013 = vset.pattern.permute.xlu0 0
        %1014 = vperm.xlu0 %1013, %v969
        %v1015 = vpop.permute.xlu0 %1014
        %1016 = vset.pattern.permute.xlu0 0
        %1017 = vperm.xlu0 %1016, %v970
        %v1018 = vpop.permute.xlu0 %1017
        %1019 = vset.pattern.permute.xlu0 0
        %1020 = vperm.xlu0 %1019, %v971
        %v1021 = vpop.permute.xlu0 %1020
        %1022 = vset.pattern.permute.xlu0 0
        %1023 = vperm.xlu0 %1022, %v972
        %v1024 = vpop.permute.xlu0 %1023
        %1025 = vset.pattern.permute.xlu0 0
        %1026 = vperm.xlu0 %1025, %v973
        %v1027 = vpop.permute.xlu0 %1026
        %1028 = vset.pattern.permute.xlu0 0
        %1029 = vperm.xlu0 %1028, %v974
        %v1030 = vpop.permute.xlu0 %1029
        %1031 = vset.pattern.permute.xlu0 0
        %1032 = vperm.xlu0 %1031, %v975
        %v1033 = vpop.permute.xlu0 %1032
        %1034 = vset.pattern.permute.xlu0 0
        %1035 = vperm.xlu0 %1034, %v976
        %v1036 = vpop.permute.xlu0 %1035
        %1037 = vset.pattern.permute.xlu0 0
        %1038 = vperm.xlu0 %1037, %v977
        %v1039 = vpop.permute.xlu0 %1038
        %1040 = vset.pattern.permute.xlu0 0
        %1041 = vperm.xlu0 %1040, %v978
        %v1042 = vpop.permute.xlu0 %1041
        %v1043 = vperm.slane %v997, %v722
        %v1044 = vperm.slane %v1000, %v724
        %v1045 = vsel %vm726, %v1044, %v1043
        %v1046 = vperm.slane %v1003, %v722
        %v1047 = vperm.slane %v1006, %v724
        %v1048 = vsel %vm726, %v1047, %v1046
        %v1049 = vperm.slane %v1009, %v722
        %v1050 = vperm.slane %v1012, %v724
        %v1051 = vsel %vm726, %v1050, %v1049
        %v1052 = vperm.slane %v1015, %v722
        %v1053 = vperm.slane %v1018, %v724
        %v1054 = vsel %vm726, %v1053, %v1052
        %v1055 = vperm.slane %v1021, %v722
        %v1056 = vperm.slane %v1024, %v724
        %v1057 = vsel %vm726, %v1056, %v1055
        %v1058 = vperm.slane %v1027, %v722
        %v1059 = vperm.slane %v1030, %v724
        %v1060 = vsel %vm726, %v1059, %v1058
        %v1061 = vperm.slane %v1033, %v722
        %v1062 = vperm.slane %v1036, %v724
        %v1063 = vsel %vm726, %v1062, %v1061
        %v1064 = vperm.slane %v1039, %v722
        %v1065 = vperm.slane %v1042, %v724
        %v1066 = vsel %vm726, %v1065, %v1064
        %v1067 = vsel %vm749, %v1048, %v1045
        %v1068 = vsel %vm751, %v1051, %v1067
        %v1069 = vsel %vm753, %v1054, %v1068
        %v1070 = vsel %vm755, %v1057, %v1069
        %v1071 = vsel %vm757, %v1060, %v1070
        %v1072 = vsel %vm759, %v1063, %v1071
        %v1073 = vsel %vm761, %v1066, %v1072
        %1075 = vst.msk [vmem:[%s409] sm:$0xff] %vm764, %v1073
        %v1092 = vmul.f32 %v411, %v997
        %v1093 = vmul.f32 %v412, %v1000
        %v1094 = vmul.f32 %v413, %v1003
        %v1095 = vmul.f32 %v414, %v1006
        %v1096 = vmul.f32 %v415, %v1009
        %v1097 = vmul.f32 %v416, %v1012
        %v1098 = vmul.f32 %v417, %v1015
        %v1099 = vmul.f32 %v418, %v1018
        %v1100 = vmul.f32 %v419, %v1021
        %v1101 = vmul.f32 %v420, %v1024
        %v1102 = vmul.f32 %v421, %v1027
        %v1103 = vmul.f32 %v422, %v1030
        %v1104 = vmul.f32 %v423, %v1033
        %v1105 = vmul.f32 %v424, %v1036
        %v1106 = vmul.f32 %v425, %v1039
        %v1107 = vmul.f32 %v426, %v1042
        %v1108 = vsel %vm435, %v1092, 0.0
        %v1109 = vsel %vm435, %v1093, 0.0
        %v1110 = vadd.f32 %v1108, %v1109
        %v1111 = vrot.slane %v1110, 4
        %v1112 = vadd.f32 %v1110, %v1111
        %v1113 = vrot.slane %v1112, 2
        %v1114 = vadd.f32 %v1112, %v1113
        %v1115 = vrot.slane %v1114, 1
        %v1116 = vadd.f32 %v1114, %v1115
        %v1117 = vsel %vm435, %v1094, 0.0
        %v1118 = vsel %vm435, %v1095, 0.0
        %v1119 = vadd.f32 %v1117, %v1118
        %v1120 = vrot.slane %v1119, 4
        %v1121 = vadd.f32 %v1119, %v1120
        %v1122 = vrot.slane %v1121, 2
        %v1123 = vadd.f32 %v1121, %v1122
        %v1124 = vrot.slane %v1123, 1
        %v1125 = vadd.f32 %v1123, %v1124
        %v1126 = vsel %vm435, %v1096, 0.0
        %v1127 = vsel %vm435, %v1097, 0.0
        %v1128 = vadd.f32 %v1126, %v1127
        %v1129 = vrot.slane %v1128, 4
        %v1130 = vadd.f32 %v1128, %v1129
        %v1131 = vrot.slane %v1130, 2
        %v1132 = vadd.f32 %v1130, %v1131
        %v1133 = vrot.slane %v1132, 1
        %v1134 = vadd.f32 %v1132, %v1133
        %v1135 = vsel %vm435, %v1098, 0.0
        %v1136 = vsel %vm435, %v1099, 0.0
        %v1137 = vadd.f32 %v1135, %v1136
        %v1138 = vrot.slane %v1137, 4
        %v1139 = vadd.f32 %v1137, %v1138
        %v1140 = vrot.slane %v1139, 2
        %v1141 = vadd.f32 %v1139, %v1140
        %v1142 = vrot.slane %v1141, 1
        %v1143 = vadd.f32 %v1141, %v1142
        %v1144 = vsel %vm435, %v1100, 0.0
        %v1145 = vsel %vm435, %v1101, 0.0
        %v1146 = vadd.f32 %v1144, %v1145
        %v1147 = vrot.slane %v1146, 4
        %v1148 = vadd.f32 %v1146, %v1147
        %v1149 = vrot.slane %v1148, 2
        %v1150 = vadd.f32 %v1148, %v1149
        %v1151 = vrot.slane %v1150, 1
        %v1152 = vadd.f32 %v1150, %v1151
        %v1153 = vsel %vm435, %v1102, 0.0
        %v1154 = vsel %vm435, %v1103, 0.0
        %v1155 = vadd.f32 %v1153, %v1154
        %v1156 = vrot.slane %v1155, 4
        %v1157 = vadd.f32 %v1155, %v1156
        %v1158 = vrot.slane %v1157, 2
        %v1159 = vadd.f32 %v1157, %v1158
        %v1160 = vrot.slane %v1159, 1
        %v1161 = vadd.f32 %v1159, %v1160
        %v1162 = vsel %vm435, %v1104, 0.0
        %v1163 = vsel %vm435, %v1105, 0.0
        %v1164 = vadd.f32 %v1162, %v1163
        %v1165 = vrot.slane %v1164, 4
        %v1166 = vadd.f32 %v1164, %v1165
        %v1167 = vrot.slane %v1166, 2
        %v1168 = vadd.f32 %v1166, %v1167
        %v1169 = vrot.slane %v1168, 1
        %v1170 = vadd.f32 %v1168, %v1169
        %v1171 = vsel %vm435, %v1106, 0.0
        %v1172 = vsel %vm435, %v1107, 0.0
        %v1173 = vadd.f32 %v1171, %v1172
        %v1174 = vrot.slane %v1173, 4
        %v1175 = vadd.f32 %v1173, %v1174
        %v1176 = vrot.slane %v1175, 2
        %v1177 = vadd.f32 %v1175, %v1176
        %v1178 = vrot.slane %v1177, 1
        %v1179 = vadd.f32 %v1177, %v1178
        %v1188 = vsel %vm749, %v1125, %v1116
        %v1189 = vsel %vm751, %v1134, %v1188
        %v1190 = vsel %vm753, %v1143, %v1189
        %v1191 = vsel %vm755, %v1152, %v1190
        %v1192 = vsel %vm757, %v1161, %v1191
        %v1193 = vsel %vm759, %v1170, %v1192
        %v1194 = vsel %vm761, %v1179, %v1193
        %1196 = vst.msk [vmem:[%s402] sm:$0xff] %vm435, %v1194
        %s1197 = sand.u32 %s198, 1
        %s1198 = scalar_lea.sflag [#allocation4], %s1197
        %s1199 = sand.u32 %s198, 1
        %s1200 = smul.addr %s1199, 8
        %s1201 = scalar_lea.vmem [#allocation10], %s1200
        %s1202 = sand.u32 %s224, 1
        %s1203 = scalar_lea.sflag [#allocation12], %s1202
        %s1204 = sand.u32 %s224, 1
        %s1205 = smul.addr %s1204, 8
        %s1206 = scalar_lea.vmem [#allocation11], %s1205
        // Predicated region
        $region65: #{tpu_custom_call.1} parent=47 // pred_check
          %p1207 = pneg %p208
        $region66: #{tpu_custom_call.1} parent=47 // pred_check_branch
          %1209 = sbr.rel (%p1207) target = $region68
        $region67: #{tpu_custom_call.1} parent=47 // pred_region
          %1211 = vsyncadd %s1198, 0
          %s1212 = smul.addr %s33, 8
          %s1213 = scalar_lea.hbm %s7, %s1212
          %s1215 = sshll.u32 %s1201, 4
          %s1216 = int_to_ptr.vmem [resolvable:$true] %s1215
          %s1217 = sshll.u32 %s1213, 4
          %s1218 = int_to_ptr.hbm [resolvable:$true] %s1217
          %1220 = dma.vmem_to_hbm [thread:$0]  %s1216, 128, %s1218, %s1198
        $region68: #{tpu_custom_call.1} parent=47 // pred_fallthru
          _
        // Predicated region
        $region69: #{tpu_custom_call.1} parent=47 // pred_check
          %p1221 = pneg %p234
        $region70: #{tpu_custom_call.1} parent=47 // pred_check_branch
          %1223 = sbr.rel (%p1221) target = $region72
        $region71: #{tpu_custom_call.1} parent=47 // pred_region
          %1225 = vsyncadd %s1203, 0
          %s1226 = smul.addr %s33, 8
          %s1227 = scalar_lea.hbm %s8, %s1226
          %s1229 = sshll.u32 %s1206, 4
          %s1230 = int_to_ptr.vmem [resolvable:$true] %s1229
          %s1231 = sshll.u32 %s1227, 4
          %s1232 = int_to_ptr.hbm [resolvable:$true] %s1231
          %1234 = dma.vmem_to_hbm [thread:$0]  %s1230, 128, %s1232, %s1203
        $region72: #{tpu_custom_call.1} parent=47 // pred_fallthru
          _
      $region48: #{tpu_custom_call.1} parent=5 // pred_fallthru
        _
      %p1235 = scmp.le.s32.totalorder 2, %s28
      // Predicated region
      $region73: #{tpu_custom_call.1} parent=5 // pred_check
        %p1236 = pneg %p1235
      $region74: #{tpu_custom_call.1} parent=5 // pred_check_branch
        %1238 = sbr.rel (%p1236) target = $region76
      $region75: #{tpu_custom_call.1} parent=5 // pred_region
        %s1239 = ssub.s32 %s28, 2
        // Predicated region
        $region77: #{tpu_custom_call.1} parent=75 // pred_check
          %p1240 = pneg %p214
        $region78: #{tpu_custom_call.1} parent=75 // pred_check_branch
          %1242 = sbr.rel (%p1240) target = $region80
        $region79: #{tpu_custom_call.1} parent=75 // pred_region
          %s1243 = sand.u32 %s199, 1
          %s1244 = scalar_lea.sflag [#allocation4], %s1243
          %s1245 = sand.u32 %s199, 1
          %s1246 = smul.addr %s1245, 8
          %s1247 = scalar_lea.vmem [#allocation10], %s1246
          %1249 = dma.done %s1244, 128
        $region80: #{tpu_custom_call.1} parent=75 // pred_fallthru
          _
        // Predicated region
        $region81: #{tpu_custom_call.1} parent=75 // pred_check
          %p1250 = pneg %p240
        $region82: #{tpu_custom_call.1} parent=75 // pred_check_branch
          %1252 = sbr.rel (%p1250) target = $region84
        $region83: #{tpu_custom_call.1} parent=75 // pred_region
          %s1253 = sand.u32 %s225, 1
          %s1254 = scalar_lea.sflag [#allocation12], %s1253
          %s1255 = sand.u32 %s225, 1
          %s1256 = smul.addr %s1255, 8
          %s1257 = scalar_lea.vmem [#allocation11], %s1256
          %1259 = dma.done %s1254, 128
        $region84: #{tpu_custom_call.1} parent=75 // pred_fallthru
          _
      $region76: #{tpu_custom_call.1} parent=5 // pred_fallthru
        _
    $region6: #{tpu_custom_call.1} parent=1 // loop_footer
      %s32 = sadd.s32 1, %s28
    $region7: #{tpu_custom_call.1} parent=1 // loop_footer_branch
      %27 = sbr.rel target = $region3
    $region8: #{tpu_custom_call.1} parent=1 // loop_exit
      _
    %1260 = vsyncpa [#allocation3], 1
    %s1261 = scalar_lea.sflag [#allocation3], 1
    %1262 = vsyncpa %s1261, 1
    %1263 = vsyncpa [#allocation6], 1
    %s1264 = scalar_lea.sflag [#allocation6], 1
    %1265 = vsyncpa %s1264, 1
    %1266 = vsyncpa [#allocation9], 1
    %1267 = vsyncpa [#allocation4], 1
    %s1268 = scalar_lea.sflag [#allocation4], 1
    %1269 = vsyncpa %s1268, 1
    %1270 = vsyncpa [#allocation12], 1
    %s1271 = scalar_lea.sflag [#allocation12], 1
    %1272 = vsyncpa %s1271, 1

</llo_original>
